<compile_context>
chip_gen: v7x
topology: tpu7x:2x2x1
jax: 0.10.0
libtpu: 0.0.40
codegen_flags: <defaults>
</compile_context>

<pallas_src>
import math
import functools

import jax
import jax.numpy as jnp
from jax.experimental import pallas as pl
from jax.experimental.pallas import tpu as pltpu


def _round_up(x: int, m: int) -> int:
    return ((x + m - 1) // m) * m


def _cdiv(a: int, b: int) -> int:
    return -(-a // b)


# -----------------------------------------------------------------------------
# Fused kernel for one (batch, length-tile) grid point.
#   x_ref    : (1, CH, TL)        current tile (CH = s2*C_in phase-major rows)
#   xlast_ref: (1, CH, TL)        host-built final tile (holds the reflect tail)
#   halo_ref : (1, 1, CH, HALO)   per-tile halo (next (K-1)//s2 phase lanes)
#   w_ref    : (C_out, K*C_in)    weights, column k*C_in + c == W[o, c, k]
#   win_ref  : (C_out, C_out)     LRN channel-window matrix (f32)
#   o_ref    : (1, C_out, TL)
#   acc_ref  : (C_out, TL) f32    VMEM accumulator scratch
# -----------------------------------------------------------------------------
def _fused_kernel(x_ref, xlast_ref, halo_ref, w_ref, win_ref, o_ref, acc_ref, *,
                  c_in, c_out, s2, ksize, k_chunk, tl_out, size, alpha, beta,
                  kconst):
    # On the final length tile use the host-built tile (the raw partial block's
    # out-of-bounds lanes are undefined and the reflect tail lives there).
    is_last = pl.program_id(1) == pl.num_programs(1) - 1
    xa = jnp.where(is_last, xlast_ref[0], x_ref[0])          # (CH, TL)
    xw = jnp.concatenate([xa, halo_ref[0, 0]], axis=-1)      # (CH, TL + HALO)

    # --- conv as chunked im2col matmuls (MXU), f32 accumulation in VMEM -----
    for k0 in range(0, ksize, k_chunk):
        kc = min(k_chunk, ksize - k0)
        pieces = []
        for k in range(k0, k0 + kc):
            r, q = k % s2, k // s2           # phase index / per-phase lane shift
            pieces.append(xw[r * c_in:(r + 1) * c_in, q:q + tl_out])
        xcol = pieces[0] if kc == 1 else jnp.concatenate(pieces, axis=0)
        part = jnp.dot(w_ref[:, k0 * c_in:(k0 + kc) * c_in], xcol,
                       preferred_element_type=jnp.float32)
        if k0 == 0:
            acc_ref[...] = part
        else:
            acc_ref[...] += part

    # --- NLReLU: log(1 + relu(x)) --------------------------------------------
    a = jnp.log1p(jnp.maximum(acc_ref[...], 0.0))

    # --- LocalResponseNorm(size=C_out): channel-window mean via tiny matmul --
    win_sum = jnp.dot(win_ref[...], a * a, preferred_element_type=jnp.float32)
    base = kconst + (alpha / size) * win_sum                  # >= kconst > 0
    if beta == 0.75:
        rt = jax.lax.rsqrt(base)                              # base^-1/2 (EUP)
        inv = rt * jnp.sqrt(rt)                               # base^-3/4
    else:
        inv = jnp.exp(-beta * jnp.log(base))                  # general base^-beta
    o_ref[0] = (a * inv).astype(o_ref.dtype)


# -----------------------------------------------------------------------------
# Wrapper: LongConv1d forward (conv mode, groups=1).
#   x: (B, C_in, L), filters: (C_out, C_in, K) -> (B, C_out, ceil(L/stride^2))
# -----------------------------------------------------------------------------
def long_conv1d_forward(x: jax.Array, filters: jax.Array, stride: int = 1, *,
                        lrn_alpha: float = 1e-4, lrn_beta: float = 0.75,
                        lrn_k: float = 1.0, compute_dtype=None,
                        tile_lanes: int = 4096, mxu_depth: int = 256
                        ) -> jax.Array:
    b, c_in, n = x.shape
    c_out, c_in2, ksize = filters.shape
    assert c_in == c_in2, (c_in, c_in2)
    assert 1 <= ksize <= n, "reflect padding requires kernel_size <= length"
    s2 = stride * stride
    m_out = _cdiv(n, s2)                     # double downsample => ceil(L/s^2)

    q_max = (ksize - 1) // s2                # max per-phase tap shift
    halo_lanes = max(128, _round_up(max(q_max, 1), 128))
    tl_out = min(_round_up(tile_lanes, 128), _round_up(m_out, 128))
    tl_out = max(tl_out, 128, halo_lanes)    # halo <= tile (used by s2>1 layout)
    t_tiles = _cdiv(m_out, tl_out)
    ch = s2 * c_in

    # Reflect tail: the only K-1 samples beyond x that any kept output needs.
    if ksize > 1:
        tail = x[:, :, n - ksize:n - 1][..., ::-1]
    else:
        tail = x[:, :, :0]

    if s2 == 1:
        # ---- feed x directly (no HBM copy of the whole input) --------------
        x_main = x
        if n < tl_out:                       # single sub-tile input: cheap pad
            x_main = jnp.pad(x, ((0, 0), (0, 0), (0, tl_out - n)))
        # Final length tile with reflect tail / zero padding (<= one tile).
        last0 = (t_tiles - 1) * tl_out
        seg = jnp.concatenate([x[:, :, last0:], tail], axis=-1)
        if seg.shape[-1] < tl_out:
            seg = jnp.pad(seg, ((0, 0), (0, 0), (0, tl_out - seg.shape[-1])))
        xlast = seg[:, :, :tl_out]
        # halo[b, t, c, h] = x_pad_zero_ext[b, c, (t+1)*tl_out + h]
        # (gather of only t_tiles*halo_lanes lanes).
        pos = ((jnp.arange(t_tiles)[:, None] + 1) * tl_out
               + jnp.arange(halo_lanes)[None, :])
        from_x = jnp.take(x, jnp.clip(pos, 0, n - 1), axis=-1)
        tail_z = jnp.concatenate(
            [tail, jnp.zeros((b, c_in, halo_lanes + 1), x.dtype)], axis=-1)
        from_t = jnp.take(tail_z, jnp.clip(pos - n, 0, tail_z.shape[-1] - 1),
                          axis=-1)
        halo = jnp.where((pos < n)[None, None], from_x, from_t)
        halo = jnp.transpose(halo, (0, 2, 1, 3))   # (b, t_tiles, c_in, halo)
    else:
        # ---- stride > 1: polyphase layout (one host pass over the input) so
        # the kernel computes only the kept output positions.
        lp = (t_tiles + 1) * tl_out
        pad = lp * s2 - n - (ksize - 1)
        assert pad >= 0
        xpz = jnp.concatenate(
            [x, tail, jnp.zeros((b, c_in, pad), x.dtype)], axis=-1)
        # row r*c_in + c, lane j  <-  x_pad[c, j*s2 + r]
        x_main = (xpz.reshape(b, c_in, lp, s2)
                  .transpose(0, 3, 1, 2).reshape(b, ch, lp))
        xlast = x_main[:, :, (t_tiles - 1) * tl_out: t_tiles * tl_out]
        halo = (x_main[:, :, tl_out:]
                .reshape(b, ch, t_tiles, tl_out)[..., :halo_lanes]
                .transpose(0, 2, 1, 3))            # (b, t_tiles, ch, halo)

    # Weights as a lane-dense slab: column k*C_in + c == W[o, c, k].
    w2d = jnp.transpose(filters, (0, 2, 1)).reshape(c_out, ksize * c_in)

    if compute_dtype is not None:            # e.g. jnp.bfloat16 on v6e / v7x
        x_main = x_main.astype(compute_dtype)
        xlast = xlast.astype(compute_dtype)
        halo = halo.astype(compute_dtype)
        w2d = w2d.astype(compute_dtype)

    # LRN window matrix (PyTorch LocalResponseNorm: zero-padded window, /size).
    size = c_out
    cc = jnp.arange(c_out)[:, None]
    cp = jnp.arange(c_out)[None, :]
    win_mat = ((cp >= cc - size // 2) & (cp <= cc + (size - 1) // 2)
               ).astype(jnp.float32)

    # im2col chunking: contraction depth ~ mxu_depth (256 native on v6e/v7x;
    # pass mxu_depth=128 on v5e).
    k_chunk = min(ksize, max(1, mxu_depth // c_in))

    kernel = functools.partial(
        _fused_kernel, c_in=c_in, c_out=c_out, s2=s2, ksize=ksize,
        k_chunk=k_chunk, tl_out=tl_out, size=size, alpha=lrn_alpha,
        beta=lrn_beta, kconst=lrn_k)

    out = pl.pallas_call(
        kernel,
        out_shape=jax.ShapeDtypeStruct((b, c_out, m_out), x.dtype),
        grid_spec=pltpu.PrefetchScalarGridSpec(
            num_scalar_prefetch=0,
            grid=(b, t_tiles),
            in_specs=[
                pl.BlockSpec((1, ch, tl_out), lambda i, t: (i, 0, t)),
                pl.BlockSpec((1, ch, tl_out), lambda i, t: (i, 0, 0)),
                pl.BlockSpec((1, 1, ch, halo_lanes), lambda i, t: (i, t, 0, 0)),
                pl.BlockSpec((c_out, ksize * c_in), lambda i, t: (0, 0)),
                pl.BlockSpec((c_out, c_out), lambda i, t: (0, 0)),
            ],
            out_specs=pl.BlockSpec((1, c_out, tl_out), lambda i, t: (i, 0, t)),
            scratch_shapes=[pltpu.VMEM((c_out, tl_out), jnp.float32)],
        ),
        compiler_params=pltpu.CompilerParams(
            dimension_semantics=("parallel", "parallel"),
            vmem_limit_bytes=64 * 1024 * 1024),
    )(x_main, xlast, halo, w2d, win_mat)
    return out


# -----------------------------------------------------------------------------
# Pure-JAX reference (same math, XLA ops) for correctness checking.
# -----------------------------------------------------------------------------
def _reference_forward(x, filters, stride=1):
    c_out, c_in, k = filters.shape
    n = x.shape[-1]
    xp = jnp.pad(x, ((0, 0), (0, 0), (0, k - 1)), mode="reflect")
    cols = jnp.stack([xp[:, :, j:j + n] for j in range(k)], axis=2)  # (B,C,K,n)
    y = jnp.einsum("bckn,ock->bon", cols, filters,
                   precision=jax.lax.Precision.HIGHEST)
    y = y[..., ::stride][..., ::stride]          # DownsampleLayer applied twice
    a = jnp.log1p(jnp.maximum(y, 0.0))
    size = c_out
    cc = jnp.arange(c_out)[:, None]
    cp = jnp.arange(c_out)[None, :]
    win = ((cp >= cc - size // 2) & (cp <= cc + (size - 1) // 2)).astype(a.dtype)
    div = jnp.einsum("oc,bcl->bol", win, a * a,
                     precision=jax.lax.Precision.HIGHEST) / size
    out = a / (1.0 + 1e-4 * div) ** 0.75
    m = int(math.ceil(n / stride))
    return out[..., :m]


if __name__ == "__main__":
    key = jax.random.PRNGKey(0)
    kx, kw, kx2 = jax.random.split(key, 3)

    batch, in_channels = 2, 4
    out_channels, kernel_size = 8, 5
    filters = jax.random.normal(
        kw, (out_channels, in_channels, kernel_size), dtype=jnp.float32
    ) * (1.0 / math.sqrt(in_channels * kernel_size))

    # --- stride = 1 -----------------------------------------------------------
    length, stride = 16, 1
    x = jax.random.normal(kx, (batch, in_channels, length), dtype=jnp.float32)
    out = jax.block_until_ready(long_conv1d_forward(x, filters, stride=stride))
    m = int(math.ceil(length / (stride * stride)))
    assert out.shape == (batch, out_channels, m), out.shape
    ref = _reference_forward(x, filters, stride=stride)
    err = float(jnp.max(jnp.abs(out - ref)))
    assert jnp.allclose(out, ref, rtol=1e-3, atol=1e-3), err

    # --- stride = 2 (exercises the polyphase / double-downsample path) --------
    length2, stride2 = 64, 2
    x2 = jax.random.normal(kx2, (batch, in_channels, length2), dtype=jnp.float32)
    out2 = jax.block_until_ready(
        long_conv1d_forward(x2, filters, stride=stride2))
    m2 = int(math.ceil(length2 / (stride2 * stride2)))
    assert out2.shape == (batch, out_channels, m2), out2.shape
    ref2 = _reference_forward(x2, filters, stride=stride2)
    err2 = float(jnp.max(jnp.abs(out2 - ref2)))
    assert jnp.allclose(out2, ref2, rtol=1e-3, atol=1e-3), err2

    assert bool(jnp.all(jnp.isfinite(out))) and bool(jnp.all(jnp.isfinite(out2)))
    print("KERNEL_OK")
</pallas_src>

<mosaic_0001>
module attributes {stable_mosaic.version = 11 : i64} {
  func.func @_fused_kernel(%arg0: i32, %arg1: i32, %arg2: memref<1x4x128xf32, #tpu.memory_space<vmem>>, %arg3: memref<1x4x128xf32, #tpu.memory_space<vmem>>, %arg4: memref<1x1x4x128xf32, #tpu.memory_space<vmem>>, %arg5: memref<8x20xf32, #tpu.memory_space<vmem>>, %arg6: memref<8x8xf32, #tpu.memory_space<vmem>>, %arg7: memref<1x8x128xf32, #tpu.memory_space<vmem>>, %arg8: memref<8x128xf32, #tpu.memory_space<vmem>>) attributes {dimension_semantics = [#tpu.dimension_semantics<parallel>, #tpu.dimension_semantics<parallel>], iteration_bounds = array<i64: 2, 1>, scalar_prefetch = 0 : i64, scratch_operands = 1 : i64, tpu.core_type = #tpu.core_type<tc>, window_params = [{transform_indices = @transform_0, window_bounds = array<i64: 1, 4, 128>}, {transform_indices = @transform_1, window_bounds = array<i64: 1, 4, 128>}, {transform_indices = @transform_2, window_bounds = array<i64: 1, 1, 4, 128>}, {pipeline_mode = #tpu.pipeline_mode<synchronous>, transform_indices = @transform_3, window_bounds = array<i64: 8, 20>}, {pipeline_mode = #tpu.pipeline_mode<synchronous>, transform_indices = @transform_4, window_bounds = array<i64: 8, 8>}, {transform_indices = @transform_5, window_bounds = array<i64: 1, 8, 128>}]} {
    %c0_i32 = arith.constant 0 : i32
    %0 = arith.cmpi eq, %arg1, %c0_i32 : i32
    %c0 = arith.constant 0 : index
    %c0_0 = arith.constant 0 : index
    %c0_1 = arith.constant 0 : index
    %1 = vector.load %arg3[%c0, %c0_0, %c0_1] : memref<1x4x128xf32, #tpu.memory_space<vmem>>, vector<1x4x128xf32>
    %2 = vector.shape_cast %1 : vector<1x4x128xf32> to vector<4x128xf32>
    %c0_2 = arith.constant 0 : index
    %c0_3 = arith.constant 0 : index
    %c0_4 = arith.constant 0 : index
    %3 = vector.load %arg2[%c0_2, %c0_3, %c0_4] : memref<1x4x128xf32, #tpu.memory_space<vmem>>, vector<1x4x128xf32>
    %4 = vector.shape_cast %3 : vector<1x4x128xf32> to vector<4x128xf32>
    %5 = arith.select %0, %2, %4 : vector<4x128xf32>
    %c0_5 = arith.constant 0 : index
    %c0_6 = arith.constant 0 : index
    %c0_7 = arith.constant 0 : index
    %c0_8 = arith.constant 0 : index
    %6 = vector.load %arg4[%c0_5, %c0_6, %c0_7, %c0_8] : memref<1x1x4x128xf32, #tpu.memory_space<vmem>>, vector<1x1x4x128xf32>
    %7 = vector.shape_cast %6 : vector<1x1x4x128xf32> to vector<4x128xf32>
    %8 = tpu.concatenate %5, %7 in 1 : vector<4x128xf32>, vector<4x128xf32> -> vector<4x256xf32>
    %9 = vector.extract_strided_slice %8 {offsets = [0, 0], sizes = [4, 128], strides = [1, 1]} : vector<4x256xf32> to vector<4x128xf32>
    %10 = vector.extract_strided_slice %8 {offsets = [0, 1], sizes = [4, 128], strides = [1, 1]} : vector<4x256xf32> to vector<4x128xf32>
    %11 = vector.extract_strided_slice %8 {offsets = [0, 2], sizes = [4, 128], strides = [1, 1]} : vector<4x256xf32> to vector<4x128xf32>
    %12 = vector.extract_strided_slice %8 {offsets = [0, 3], sizes = [4, 128], strides = [1, 1]} : vector<4x256xf32> to vector<4x128xf32>
    %13 = vector.extract_strided_slice %8 {offsets = [0, 4], sizes = [4, 128], strides = [1, 1]} : vector<4x256xf32> to vector<4x128xf32>
    %14 = tpu.concatenate %9, %10, %11, %12, %13 in 0 : vector<4x128xf32>, vector<4x128xf32>, vector<4x128xf32>, vector<4x128xf32>, vector<4x128xf32> -> vector<20x128xf32>
    %c0_9 = arith.constant 0 : index
    %c0_10 = arith.constant 0 : index
    %15 = vector.load %arg5[%c0_9, %c0_10] : memref<8x20xf32, #tpu.memory_space<vmem>>, vector<8x20xf32>
    %cst = arith.constant dense<0.000000e+00> : vector<8x128xf32>
    %16 = tpu.matmul %15, %14, %cst {dimension_numbers = #tpu.dot_dimension_numbers<[1], [0], [0], [1], [0, 0, 1, 1], [], []>} : vector<8x20xf32>, vector<20x128xf32>, vector<8x128xf32> -> vector<8x128xf32>
    %c0_11 = arith.constant 0 : index
    %c0_12 = arith.constant 0 : index
    %17 = vector.load %arg8[%c0_11, %c0_12] : memref<8x128xf32, #tpu.memory_space<vmem>>, vector<8x128xf32>
    tpu.vector_store %arg8[%c0_11, %c0_12], %16 {strides = array<i32>} : memref<8x128xf32, #tpu.memory_space<vmem>>, vector<8x128xf32>,
    %c0_13 = arith.constant 0 : index
    %c0_14 = arith.constant 0 : index
    %18 = vector.load %arg8[%c0_13, %c0_14] : memref<8x128xf32, #tpu.memory_space<vmem>>, vector<8x128xf32>
    %cst_15 = arith.constant 0.000000e+00 : f32
    %19 = vector.broadcast %cst_15 : f32 to vector<8x128xf32>
    %20 = arith.maximumf %18, %19 : vector<8x128xf32>
    %21 = math.log1p %20 : vector<8x128xf32>
    %c0_16 = arith.constant 0 : index
    %c0_17 = arith.constant 0 : index
    %22 = vector.load %arg6[%c0_16, %c0_17] : memref<8x8xf32, #tpu.memory_space<vmem>>, vector<8x8xf32>
    %23 = arith.mulf %21, %21 : vector<8x128xf32>
    %cst_18 = arith.constant dense<0.000000e+00> : vector<8x128xf32>
    %24 = tpu.matmul %22, %23, %cst_18 {dimension_numbers = #tpu.dot_dimension_numbers<[1], [0], [0], [1], [0, 0, 1, 1], [], []>} : vector<8x8xf32>, vector<8x128xf32>, vector<8x128xf32> -> vector<8x128xf32>
    %cst_19 = arith.constant 1.250000e-05 : f32
    %25 = vector.broadcast %cst_19 : f32 to vector<8x128xf32>
    %26 = arith.mulf %25, %24 : vector<8x128xf32>
    %cst_20 = arith.constant 1.000000e+00 : f32
    %27 = vector.broadcast %cst_20 : f32 to vector<8x128xf32>
    %28 = arith.addf %27, %26 : vector<8x128xf32>
    %29 = math.rsqrt %28 : vector<8x128xf32>
    %30 = math.sqrt %29 : vector<8x128xf32>
    %31 = arith.mulf %29, %30 : vector<8x128xf32>
    %32 = arith.mulf %21, %31 : vector<8x128xf32>
    %c0_21 = arith.constant 0 : index
    %c0_22 = arith.constant 0 : index
    %c0_23 = arith.constant 0 : index
    %33 = vector.load %arg7[%c0_21, %c0_22, %c0_23] : memref<1x8x128xf32, #tpu.memory_space<vmem>>, vector<1x8x128xf32>
    %34 = vector.shape_cast %33 : vector<1x8x128xf32> to vector<8x128xf32>
    %35 = vector.shape_cast %32 : vector<8x128xf32> to vector<1x8x128xf32>
    tpu.vector_store %arg7[%c0_21, %c0_22, %c0_23], %35 {strides = array<i32>} : memref<1x8x128xf32, #tpu.memory_space<vmem>>, vector<1x8x128xf32>,
    return
  }
  func.func @transform_0(%arg0: i32, %arg1: i32) -> (i32, i32, i32) {
    %c0_i32 = arith.constant 0 : i32
    %c0_i32_0 = arith.constant 0 : i32
    return %arg0, %c0_i32, %arg1 : i32, i32, i32
  }
  func.func @transform_1(%arg0: i32, %arg1: i32) -> (i32, i32, i32) {
    %c0_i32 = arith.constant 0 : i32
    %c0_i32_0 = arith.constant 0 : i32
    %c0_i32_1 = arith.constant 0 : i32
    return %arg0, %c0_i32, %c0_i32_0 : i32, i32, i32
  }
  func.func @transform_2(%arg0: i32, %arg1: i32) -> (i32, i32, i32, i32) {
    %c0_i32 = arith.constant 0 : i32
    %c0_i32_0 = arith.constant 0 : i32
    %c0_i32_1 = arith.constant 0 : i32
    return %arg0, %arg1, %c0_i32, %c0_i32_0 : i32, i32, i32, i32
  }
  func.func @transform_3(%arg0: i32, %arg1: i32) -> (i32, i32) {
    %c0_i32 = arith.constant 0 : i32
    %c0_i32_0 = arith.constant 0 : i32
    %c0_i32_1 = arith.constant 0 : i32
    return %c0_i32, %c0_i32_0 : i32, i32
  }
  func.func @transform_4(%arg0: i32, %arg1: i32) -> (i32, i32) {
    %c0_i32 = arith.constant 0 : i32
    %c0_i32_0 = arith.constant 0 : i32
    %c0_i32_1 = arith.constant 0 : i32
    return %c0_i32, %c0_i32_0 : i32, i32
  }
  func.func @transform_5(%arg0: i32, %arg1: i32) -> (i32, i32, i32) {
    %c0_i32 = arith.constant 0 : i32
    %c0_i32_0 = arith.constant 0 : i32
    return %arg0, %c0_i32, %arg1 : i32, i32, i32
  }
}

</mosaic_0001>

<llo_original>
// kernel: tpu_custom_call.1
$region0: #{tpu_custom_call.1}
  #allocation0 [shape = 'u32[]', space=smem, size = 0x4, offset = 0x4, fixed_abs, tag = 'smem constant byte address 0x4 - core index']
  #allocation1 [shape = 'u32[144,128]{1,0:T(1,128)}', space=vmem, size = 0x12000, scoped, tag = 'internal scratch']
  #allocation2 [shape = 'f32[8,128]{1,0:T(8,128)}', space=vmem, size = 0x1000, scoped, tag = 'scratch operand']
  %s0 = inlined_call_operand.hbm [shape: f32[2,4,128], index: 0, kind: input, shape index: {}]
  %s1 = inlined_call_operand.hbm [shape: f32[2,4,128], index: 1, kind: input, shape index: {}]
  %s2 = inlined_call_operand.hbm [shape: f32[2,1,4,128], index: 2, kind: input, shape index: {}]
  %s3 = inlined_call_operand.hbm [shape: f32[8,20], index: 3, kind: input, shape index: {}]
  %s4 = inlined_call_operand.hbm [shape: f32[8,8], index: 4, kind: input, shape index: {}]
  %s5 = inlined_call_operand.hbm [shape: f32[2,8,16], index: 5, kind: output, shape index: {}]
  %s6 = sld [smem:[#allocation0]]
  $region73: #{tpu_custom_call.1} parent=0
    _
  %s8 = ssub.s32 1, %s6
  %s9 = scalar_select 0, %s8, %s6
  $region1: #{tpu_custom_call.1} parent=0
    #allocation3 [shape = 'u8[4096]{0}', space=vmem, size = 0x1000, scoped, tag = 'input window, operand 0']
    #allocation4 [shape = 's32[2]{0}', space=sflag, size = 0x8, scoped, tag = 'scoped memory for tpu_custom_call.1']
    #allocation5 [shape = 's32[2]{0}', space=sflag, size = 0x8, scoped, tag = 'scoped memory for tpu_custom_call.1']
    #allocation6 [shape = 'u8[4096]{0}', space=vmem, size = 0x1000, scoped, tag = 'input window, operand 1']
    #allocation7 [shape = 's32[2]{0}', space=sflag, size = 0x8, scoped, tag = 'scoped memory for tpu_custom_call.1']
    #allocation8 [shape = 'u8[4096]{0}', space=vmem, size = 0x1000, scoped, tag = 'input window, operand 2']
    #allocation9 [shape = 'u8[4096]{0}', space=vmem, size = 0x1000, scoped, tag = 'input window, operand 3, single buffered']
    #allocation10 [shape = 's32[1]{0}', space=sflag, size = 0x4, scoped, tag = 'scoped memory for tpu_custom_call.1']
    #allocation11 [shape = 'u8[4096]{0}', space=vmem, size = 0x1000, scoped, tag = 'input window, operand 4, single buffered']
    #allocation12 [shape = 'u8[8192]{0}', space=vmem, size = 0x2000, scoped, tag = 'output window, operand 0']
    %10 = vsyncpa [#allocation4], 0
    %s11 = scalar_lea.sflag [#allocation4], 1
    %12 = vsyncpa %s11, 0
    %13 = vsyncpa [#allocation7], 0
    %s14 = scalar_lea.sflag [#allocation7], 1
    %15 = vsyncpa %s14, 0
    %16 = vsyncpa [#allocation10], 0
    %17 = vsyncpa [#allocation5], 0
    %s18 = scalar_lea.sflag [#allocation5], 1
    %19 = vsyncpa %s18, 0
    loop: start=0, step=1, limit=4
    $region2: #{tpu_custom_call.1} parent=1 // loop_pre_header
      _
    $region3: #{tpu_custom_call.1} parent=1 // loop_header
      %s21 = sphi 0, %s25
      %p22 = scmp.ge.s32.totalorder %s21, 4
      %s28 = sphi 0, %s40
      %s29 = sphi 0, %s36
      %s30 = sphi 0, %s28
      %s31 = sphi 0, %s29
      %s32 = sphi 0, %s30
      %s33 = sphi 0, %s31
      %s45 = sphi 0, %s47
      %s48 = sphi 0, %s45
      %s49 = sphi 0, %s48
      %s65 = sphi 0, %s49
      %s71 = sphi 0, %s73
      %s74 = sphi 0, %s71
      %s75 = sphi 0, %s74
      %s91 = sphi 0, %s75
      %s99 = sphi 0, %s101
      %s102 = sphi 0, %s99
      %s103 = sphi 0, %s102
      %s119 = sphi 0, %s103
      %s123 = sphi 0, %s123
      %s125 = sphi 0, %s123
      %s126 = sphi 0, %s125
      %s140 = sphi 0, %s126
      %s144 = sphi 0, %s144
      %s146 = sphi 0, %s144
      %s147 = sphi 0, %s146
      %s161 = sphi 0, %s147
      %s169 = sphi 0, %s171
      %s172 = sphi 0, %s169
      %s173 = sphi 0, %s172
      %s189 = sphi 0, %s173
    $region4: #{tpu_custom_call.1} parent=1 // loop_header_branch
      %24 = sbr.rel (%p22) target = $region8
    $region5: #{tpu_custom_call.1} parent=1 // loop_body
      %s26 = ssub.s32 %s21, 1
      %s27 = ssub.s32 %s21, 2
      %s34 = sadd.s32 1, %s29
      %p35 = scmp.ge.s32.totalorder %s34, 1
      %s36 = scalar_select %p35, 0, %s34
      %s37 = sadd.s32 1, %s28
      %s38 = scalar_select %p35, %s37, %s28
      %p39 = scmp.ge.s32.totalorder %s38, 2
      %s40 = scalar_select %p39, 0, %s38
      %s41 = ssub.s32 %s28, %s40
      %s42 = ssub.s32 %s29, %s36
      %s43 = sor.u32 %s41, %s42
      %p44 = scmp.eq.s32.totalorder %s43, 0
      %s46 = sadd.s32 %s45, 1
      %s47 = scalar_select %p44, %s45, %s46
      %p50 = pneg %p44
      %p51 = scmp.eq.s32.totalorder %s21, 1
      %p52 = por %p50, %p51
      %p53 = scmp.ne.s32.totalorder %s45, %s48
      %p54 = scmp.eq.s32.totalorder %s21, 0
      %p55 = por %p53, %p54
      %p56 = scmp.ne.s32.totalorder %s45, %s48
      %p57 = scmp.eq.s32.totalorder %s26, 1
      %p58 = por %p56, %p57
      %p59 = scmp.ne.s32.totalorder %s48, %s49
      %p60 = scmp.eq.s32.totalorder %s26, 0
      %p61 = por %p59, %p60
      %p62 = scmp.ne.s32.totalorder %s48, %s49
      %p63 = scmp.eq.s32.totalorder %s27, 1
      %p64 = por %p62, %p63
      %p66 = scmp.ne.s32.totalorder %s49, %s65
      %p67 = scmp.eq.s32.totalorder %s27, 0
      %p68 = por %p66, %p67
      %s69 = ssub.s32 %s28, %s40
      %p70 = scmp.eq.s32.totalorder %s69, 0
      %s72 = sadd.s32 %s71, 1
      %s73 = scalar_select %p70, %s71, %s72
      %p76 = pneg %p70
      %p77 = scmp.eq.s32.totalorder %s21, 1
      %p78 = por %p76, %p77
      %p79 = scmp.ne.s32.totalorder %s71, %s74
      %p80 = scmp.eq.s32.totalorder %s21, 0
      %p81 = por %p79, %p80
      %p82 = scmp.ne.s32.totalorder %s71, %s74
      %p83 = scmp.eq.s32.totalorder %s26, 1
      %p84 = por %p82, %p83
      %p85 = scmp.ne.s32.totalorder %s74, %s75
      %p86 = scmp.eq.s32.totalorder %s26, 0
      %p87 = por %p85, %p86
      %p88 = scmp.ne.s32.totalorder %s74, %s75
      %p89 = scmp.eq.s32.totalorder %s27, 1
      %p90 = por %p88, %p89
      %p92 = scmp.ne.s32.totalorder %s75, %s91
      %p93 = scmp.eq.s32.totalorder %s27, 0
      %p94 = por %p92, %p93
      %s95 = ssub.s32 %s28, %s40
      %s96 = ssub.s32 %s29, %s36
      %s97 = sor.u32 %s95, %s96
      %p98 = scmp.eq.s32.totalorder %s97, 0
      %s100 = sadd.s32 %s99, 1
      %s101 = scalar_select %p98, %s99, %s100
      %p104 = pneg %p98
      %p105 = scmp.eq.s32.totalorder %s21, 1
      %p106 = por %p104, %p105
      %p107 = scmp.ne.s32.totalorder %s99, %s102
      %p108 = scmp.eq.s32.totalorder %s21, 0
      %p109 = por %p107, %p108
      %p110 = scmp.ne.s32.totalorder %s99, %s102
      %p111 = scmp.eq.s32.totalorder %s26, 1
      %p112 = por %p110, %p111
      %p113 = scmp.ne.s32.totalorder %s102, %s103
      %p114 = scmp.eq.s32.totalorder %s26, 0
      %p115 = por %p113, %p114
      %p116 = scmp.ne.s32.totalorder %s102, %s103
      %p117 = scmp.eq.s32.totalorder %s27, 1
      %p118 = por %p116, %p117
      %p120 = scmp.ne.s32.totalorder %s103, %s119
      %p121 = scmp.eq.s32.totalorder %s27, 0
      %p122 = por %p120, %p121
      %s124 = sadd.s32 %s123, 1
      %p127 = scmp.eq.s32.totalorder %s21, 1
      %p128 = scmp.ne.s32.totalorder %s123, %s125
      %p129 = scmp.eq.s32.totalorder %s21, 0
      %p130 = por %p128, %p129
      %p131 = scmp.ne.s32.totalorder %s123, %s125
      %p132 = scmp.eq.s32.totalorder %s26, 1
      %p133 = por %p131, %p132
      %p134 = scmp.ne.s32.totalorder %s125, %s126
      %p135 = scmp.eq.s32.totalorder %s26, 0
      %p136 = por %p134, %p135
      %p137 = scmp.ne.s32.totalorder %s125, %s126
      %p138 = scmp.eq.s32.totalorder %s27, 1
      %p139 = por %p137, %p138
      %p141 = scmp.ne.s32.totalorder %s126, %s140
      %p142 = scmp.eq.s32.totalorder %s27, 0
      %p143 = por %p141, %p142
      %s145 = sadd.s32 %s144, 1
      %p148 = scmp.eq.s32.totalorder %s21, 1
      %p149 = scmp.ne.s32.totalorder %s144, %s146
      %p150 = scmp.eq.s32.totalorder %s21, 0
      %p151 = por %p149, %p150
      %p152 = scmp.ne.s32.totalorder %s144, %s146
      %p153 = scmp.eq.s32.totalorder %s26, 1
      %p154 = por %p152, %p153
      %p155 = scmp.ne.s32.totalorder %s146, %s147
      %p156 = scmp.eq.s32.totalorder %s26, 0
      %p157 = por %p155, %p156
      %p158 = scmp.ne.s32.totalorder %s146, %s147
      %p159 = scmp.eq.s32.totalorder %s27, 1
      %p160 = por %p158, %p159
      %p162 = scmp.ne.s32.totalorder %s147, %s161
      %p163 = scmp.eq.s32.totalorder %s27, 0
      %p164 = por %p162, %p163
      %s165 = ssub.s32 %s28, %s40
      %s166 = ssub.s32 %s29, %s36
      %s167 = sor.u32 %s165, %s166
      %p168 = scmp.eq.s32.totalorder %s167, 0
      %s170 = sadd.s32 %s169, 1
      %s171 = scalar_select %p168, %s169, %s170
      %p174 = pneg %p168
      %p175 = scmp.eq.s32.totalorder %s21, 1
      %p176 = por %p174, %p175
      %p177 = scmp.ne.s32.totalorder %s169, %s172
      %p178 = scmp.eq.s32.totalorder %s21, 0
      %p179 = por %p177, %p178
      %p180 = scmp.ne.s32.totalorder %s169, %s172
      %p181 = scmp.eq.s32.totalorder %s26, 1
      %p182 = por %p180, %p181
      %p183 = scmp.ne.s32.totalorder %s172, %s173
      %p184 = scmp.eq.s32.totalorder %s26, 0
      %p185 = por %p183, %p184
      %p186 = scmp.ne.s32.totalorder %s172, %s173
      %p187 = scmp.eq.s32.totalorder %s27, 1
      %p188 = por %p186, %p187
      %p190 = scmp.ne.s32.totalorder %s173, %s189
      %p191 = scmp.eq.s32.totalorder %s27, 0
      %p192 = por %p190, %p191
      %p193 = scmp.le.s32.totalorder 1, %s21
      %p194 = scmp.lt.s32.totalorder %s21, 3
      %p195 = pnand %p193, %p194
      %p196 = pneg %p195
      // Predicated region
      $region9: #{tpu_custom_call.1} parent=5 // pred_check
        _
      $region10: #{tpu_custom_call.1} parent=5 // pred_check_branch
        %198 = sbr.rel (%p195) target = $region12
      $region11: #{tpu_custom_call.1} parent=5 // pred_region
        %s199 = ssub.s32 %s21, 1
        // Predicated region
        $region13: #{tpu_custom_call.1} parent=11 // pred_check
          %p200 = pneg %p136
        $region14: #{tpu_custom_call.1} parent=11 // pred_check_branch
          %202 = sbr.rel (%p200) target = $region16
        $region15: #{tpu_custom_call.1} parent=11 // pred_region
          %s204 = ssub.s32 128, 128
          %205 = vsyncadd [#allocation10], %s204
          %s207 = sshll.u32 [#allocation9], 4
          %s208 = int_to_ptr.vmem [resolvable:$true] %s207
          %210 = dma.hbm_to_vmem [thread:$0]  %s3, 128, %s208, [#allocation10]
        $region16: #{tpu_custom_call.1} parent=11 // pred_fallthru
          _
        // Predicated region
        $region17: #{tpu_custom_call.1} parent=11 // pred_check
          %p211 = pneg %p157
        $region18: #{tpu_custom_call.1} parent=11 // pred_check_branch
          %213 = sbr.rel (%p211) target = $region20
        $region19: #{tpu_custom_call.1} parent=11 // pred_region
          %s215 = ssub.s32 128, 128
          %216 = vsyncadd [#allocation10], %s215
          %s218 = sshll.u32 [#allocation11], 4
          %s219 = int_to_ptr.vmem [resolvable:$true] %s218
          %221 = dma.hbm_to_vmem [thread:$0]  %s4, 128, %s219, [#allocation10]
        $region20: #{tpu_custom_call.1} parent=11 // pred_fallthru
          _
      $region12: #{tpu_custom_call.1} parent=5 // pred_fallthru
        _
      %p222 = scmp.lt.s32.totalorder %s21, 2
      // Predicated region
      $region21: #{tpu_custom_call.1} parent=5 // pred_check
        %p223 = pneg %p222
      $region22: #{tpu_custom_call.1} parent=5 // pred_check_branch
        %225 = sbr.rel (%p223) target = $region24
      $region23: #{tpu_custom_call.1} parent=5 // pred_region
        // Predicated region
        $region25: #{tpu_custom_call.1} parent=23 // pred_check
          %p226 = pneg %p55
        $region26: #{tpu_custom_call.1} parent=23 // pred_check_branch
          %228 = sbr.rel (%p226) target = $region28
        $region27: #{tpu_custom_call.1} parent=23 // pred_region
          %s229 = sand.u32 %s45, 1
          %s230 = scalar_lea.sflag [#allocation4], %s229
          %s231 = sand.u32 %s45, 1
          %s232 = smul.addr %s231, 4
          %s233 = scalar_lea.vmem [#allocation3], %s232
          %s235 = ssub.s32 64, 64
          %236 = vsyncadd %s230, %s235
          %s237 = sadd.s32 %s29, %s28
          %s238 = smul.addr %s237, 64
          %s239 = scalar_lea.hbm %s0, %s238
          %s241 = sshll.u32 %s233, 4
          %s242 = int_to_ptr.vmem [resolvable:$true] %s241
          %244 = dma.hbm_to_vmem [thread:$0]  %s239, 64, %s242, %s230
        $region28: #{tpu_custom_call.1} parent=23 // pred_fallthru
          _
        // Predicated region
        $region29: #{tpu_custom_call.1} parent=23 // pred_check
          %p245 = pneg %p81
        $region30: #{tpu_custom_call.1} parent=23 // pred_check_branch
          %247 = sbr.rel (%p245) target = $region32
        $region31: #{tpu_custom_call.1} parent=23 // pred_region
          %s248 = sand.u32 %s21, 1
          %s249 = scalar_lea.sflag [#allocation7], %s248
          %s250 = sand.u32 %s71, 1
          %s251 = smul.addr %s250, 4
          %s252 = scalar_lea.vmem [#allocation6], %s251
          %s254 = ssub.s32 64, 64
          %255 = vsyncadd %s249, %s254
          %s256 = smul.addr %s28, 64
          %s257 = scalar_lea.hbm %s1, %s256
          %s259 = sshll.u32 %s252, 4
          %s260 = int_to_ptr.vmem [resolvable:$true] %s259
          %262 = dma.hbm_to_vmem [thread:$0]  %s257, 64, %s260, %s249
        $region32: #{tpu_custom_call.1} parent=23 // pred_fallthru
          _
        // Predicated region
        $region33: #{tpu_custom_call.1} parent=23 // pred_check
          %p263 = pneg %p109
        $region34: #{tpu_custom_call.1} parent=23 // pred_check_branch
          %265 = sbr.rel (%p263) target = $region36
        $region35: #{tpu_custom_call.1} parent=23 // pred_region
          %s266 = sand.u32 %s21, 1
          %s267 = scalar_lea.sflag [#allocation7], %s266
          %s268 = sand.u32 %s99, 1
          %s269 = smul.addr %s268, 4
          %s270 = scalar_lea.vmem [#allocation8], %s269
          %s272 = ssub.s32 64, 64
          %273 = vsyncadd %s267, %s272
          %s274 = sadd.s32 %s29, %s28
          %s275 = smul.addr %s274, 64
          %s276 = scalar_lea.hbm %s2, %s275
          %s278 = sshll.u32 %s270, 4
          %s279 = int_to_ptr.vmem [resolvable:$true] %s278
          %281 = dma.hbm_to_vmem [thread:$0]  %s276, 64, %s279, %s267
        $region36: #{tpu_custom_call.1} parent=23 // pred_fallthru
          _
      $region24: #{tpu_custom_call.1} parent=5 // pred_fallthru
        _
      %p282 = scmp.le.s32.totalorder 1, %s21
      %p283 = scmp.lt.s32.totalorder %s21, 3
      %p284 = pnand %p282, %p283
      %p285 = pneg %p284
      // Predicated region
      $region37: #{tpu_custom_call.1} parent=5 // pred_check
        _
      $region38: #{tpu_custom_call.1} parent=5 // pred_check_branch
        %287 = sbr.rel (%p284) target = $region40
      $region39: #{tpu_custom_call.1} parent=5 // pred_region
        %s288 = ssub.s32 %s21, 1
        %s289 = sand.u32 %s48, 1
        %s290 = scalar_lea.sflag [#allocation4], %s289
        %s291 = sand.u32 %s48, 1
        %s292 = smul.addr %s291, 4
        %s293 = scalar_lea.vmem [#allocation3], %s292
        // Predicated region
        $region41: #{tpu_custom_call.1} parent=39 // pred_check
          %p294 = pneg %p61
        $region42: #{tpu_custom_call.1} parent=39 // pred_check_branch
          %296 = sbr.rel (%p294) target = $region44
        $region43: #{tpu_custom_call.1} parent=39 // pred_region
          %297 = dma.done %s290, 64
        $region44: #{tpu_custom_call.1} parent=39 // pred_fallthru
          _
        %s298 = sand.u32 %s26, 1
        %s299 = scalar_lea.sflag [#allocation7], %s298
        %s300 = sand.u32 %s74, 1
        %s301 = smul.addr %s300, 4
        %s302 = scalar_lea.vmem [#allocation6], %s301
        // Predicated region
        $region45: #{tpu_custom_call.1} parent=39 // pred_check
          %p303 = pneg %p87
        $region46: #{tpu_custom_call.1} parent=39 // pred_check_branch
          %305 = sbr.rel (%p303) target = $region48
        $region47: #{tpu_custom_call.1} parent=39 // pred_region
          %306 = dma.done %s299, 64
        $region48: #{tpu_custom_call.1} parent=39 // pred_fallthru
          _
        %s307 = sand.u32 %s26, 1
        %s308 = scalar_lea.sflag [#allocation7], %s307
        %s309 = sand.u32 %s102, 1
        %s310 = smul.addr %s309, 4
        %s311 = scalar_lea.vmem [#allocation8], %s310
        // Predicated region
        $region49: #{tpu_custom_call.1} parent=39 // pred_check
          %p312 = pneg %p115
        $region50: #{tpu_custom_call.1} parent=39 // pred_check_branch
          %314 = sbr.rel (%p312) target = $region52
        $region51: #{tpu_custom_call.1} parent=39 // pred_region
          %315 = dma.done %s308, 64
        $region52: #{tpu_custom_call.1} parent=39 // pred_fallthru
          _
        // Predicated region
        $region53: #{tpu_custom_call.1} parent=39 // pred_check
          %p316 = pneg %p136
        $region54: #{tpu_custom_call.1} parent=39 // pred_check_branch
          %318 = sbr.rel (%p316) target = $region56
        $region55: #{tpu_custom_call.1} parent=39 // pred_region
          %319 = dma.done [#allocation10], 128
        $region56: #{tpu_custom_call.1} parent=39 // pred_fallthru
          _
        // Predicated region
        $region57: #{tpu_custom_call.1} parent=39 // pred_check
          %p320 = pneg %p157
        $region58: #{tpu_custom_call.1} parent=39 // pred_check_branch
          %322 = sbr.rel (%p320) target = $region60
        $region59: #{tpu_custom_call.1} parent=39 // pred_region
          %323 = dma.done [#allocation10], 128
        $region60: #{tpu_custom_call.1} parent=39 // pred_fallthru
          _
        %s324 = sand.u32 %s48, 1
        %s325 = scalar_lea.sflag [#allocation4], %s324
        %s326 = sand.u32 %s48, 1
        %s327 = smul.addr %s326, 4
        %s328 = scalar_lea.vmem [#allocation3], %s327
        %p329 = pneg %p61
        %p330 = pneg %p58
        %s331 = sand.u32 %s26, 1
        %s332 = scalar_lea.sflag [#allocation7], %s331
        %s333 = sand.u32 %s74, 1
        %s334 = smul.addr %s333, 4
        %s335 = scalar_lea.vmem [#allocation6], %s334
        %p336 = pneg %p87
        %p337 = pneg %p84
        %s338 = sand.u32 %s26, 1
        %s339 = scalar_lea.sflag [#allocation7], %s338
        %s340 = sand.u32 %s102, 1
        %s341 = smul.addr %s340, 4
        %s342 = scalar_lea.vmem [#allocation8], %s341
        %p343 = pneg %p115
        %p344 = pneg %p112
        %p345 = pneg %p136
        %p346 = pneg %p133
        %p347 = pneg %p157
        %p348 = pneg %p154
        %p349 = pneg %p185
        %p350 = pneg %p182
        %s351 = sand.u32 %s172, 1
        %s352 = scalar_lea.sflag [#allocation5], %s351
        %s353 = sand.u32 %s172, 1
        %s354 = smul.addr %s353, 8
        %s355 = scalar_lea.vmem [#allocation12], %s354
        %p356 = scmp.eq.s32.totalorder %s31, 0
        %v357 = vld [vmem:[%s302] sm:$0xf]
        %v358 = vld [vmem:[%s293] sm:$0xf]
        %s359 = scalar_select %p356, 1, 0
        %v360 = vstv %s359
        %vm361 = vcmp.eq.s32.totalorder %v360, 1
        %v362 = vsel %vm361, %v357, %v358
        %v363 = vld [vmem:[%s311] sm:$0xf]
        %v366 = vrot.slane %v362, 4
        %v367 = vrot.slane %v363, 4
        %368 = vrot.lane.b32.xlu0 %v366, 127
        %v369 = vpop.permute.xlu0 %368
        %370 = vrot.lane.b32.xlu0 %v367, 127
        %v371 = vpop.permute.xlu0 %370
        %vm372 = vcmask 1039360
        %v373 = vsel %vm372, %v369, %v371
        %375 = vrot.lane.b32.xlu0 %v362, 126
        %v376 = vpop.permute.xlu0 %375
        %377 = vrot.lane.b32.xlu0 %v363, 126
        %v378 = vpop.permute.xlu0 %377
        %vm379 = vcmask 1031168
        %v380 = vsel %vm379, %v376, %v378
        %382 = vrot.lane.b32.xlu0 %v366, 125
        %v383 = vpop.permute.xlu0 %382
        %384 = vrot.lane.b32.xlu0 %v367, 125
        %v385 = vpop.permute.xlu0 %384
        %vm386 = vcmask 1022976
        %v387 = vsel %vm386, %v383, %v385
        %389 = vrot.lane.b32.xlu0 %v362, 124
        %v390 = vpop.permute.xlu0 %389
        %391 = vrot.lane.b32.xlu0 %v363, 124
        %v392 = vpop.permute.xlu0 %391
        %vm393 = vcmask 1014784
        %v394 = vsel %vm393, %v390, %v392
        %vm395 = vcmask 1043456
        %v396 = vsel %vm395, %v362, %v373
        %v397 = vsel %vm395, %v380, %v387
        %v398 = vld [vmem:[#allocation9] sm:$0xff]
        %vm399 = vcmask 162816
        %v401 = vsel %vm399, %v398, 0
        %v403 = vsel %vm395, %v394, 0
        %405 = vmatprep.subr.mxu0 0.0
        %406 = vmatpush1.msra.mxu0 %v396
        %407 = vmatprep.subr.mxu0 0.0
        %408 = vmatpush1.msra.mxu0 %v397
        %409 = vmatprep.subr.mxu0 0.0
        %410 = vmatpush1.msra.mxu0 %v403
        %411 = vmatprep.subr.mxu0 0.0
        %412 = vmatpush1.msra.mxu0 0.0
        %413 = vmatprep.subr.mxu0 0.0
        %414 = vmatpush1.msra.mxu0 0.0
        %415 = vmatprep.subr.mxu0 0.0
        %416 = vmatpush1.msra.mxu0 0.0
        %417 = vmatprep.subr.mxu0 0.0
        %418 = vmatpush1.msra.mxu0 0.0
        %419 = vmatprep.subr.mxu0 0.0
        %420 = vmatpush1.msra.mxu0 0.0
        %421 = vmatprep.subr.mxu0 0.0
        %422 = vmatpush1.msra.mxu0 0.0
        %423 = vmatprep.subr.mxu0 0.0
        %424 = vmatpush1.msra.mxu0 0.0
        %425 = vmatprep.subr.mxu0 0.0
        %426 = vmatpush1.msra.mxu0 0.0
        %427 = vmatprep.subr.mxu0 0.0
        %428 = vmatpush1.msra.mxu0 0.0
        %429 = vmatprep.subr.mxu0 0.0
        %430 = vmatpush1.msra.mxu0 0.0
        %431 = vmatprep.subr.mxu0 0.0
        %432 = vmatpush1.msra.mxu0 0.0
        %433 = vmatprep.subr.mxu0 0.0
        %434 = vmatpush1.msra.mxu0 0.0
        %435 = vmatprep.subr.mxu0 0.0
        %436 = vmatpush1.msra.mxu0 0.0
        %437 = vmatprep.subr.mxu0 0.0
        %438 = vmatpush1.msra.mxu0 0.0
        %439 = vmatprep.subr.mxu0 0.0
        %440 = vmatpush1.msra.mxu0 0.0
        %441 = vmatprep.subr.mxu0 0.0
        %442 = vmatpush1.msra.mxu0 0.0
        %443 = vmatprep.subr.mxu0 0.0
        %444 = vmatpush1.msra.mxu0 0.0
        %445 = vmatprep.subr.mxu0 0.0
        %446 = vmatpush1.msra.mxu0 0.0
        %447 = vmatprep.subr.mxu0 0.0
        %448 = vmatpush1.msra.mxu0 0.0
        %449 = vmatprep.subr.mxu0 0.0
        %450 = vmatpush1.msra.mxu0 0.0
        %451 = vmatprep.subr.mxu0 0.0
        %452 = vmatpush1.msra.mxu0 0.0
        %453 = vmatprep.subr.mxu0 0.0
        %454 = vmatpush1.msra.mxu0 0.0
        %455 = vmatprep.subr.mxu0 0.0
        %456 = vmatpush1.msra.mxu0 0.0
        %457 = vmatprep.subr.mxu0 0.0
        %458 = vmatpush1.msra.mxu0 0.0
        %459 = vmatprep.subr.mxu0 0.0
        %460 = vmatpush1.msra.mxu0 0.0
        %461 = vmatprep.subr.mxu0 0.0
        %462 = vmatpush1.msra.mxu0 0.0
        %463 = vmatprep.subr.mxu0 0.0
        %464 = vmatpush1.msra.mxu0 0.0
        %465 = vmatprep.subr.mxu0 0.0
        %466 = vmatpush1.msra.mxu0 0.0
        %467 = vmatprep.subr.mxu0 0.0
        %468 = vmatpush1.msra.mxu0 0.0
        %469 = vmatprep.mubr.f32.mxu0 0.0
        %470 = vmatmul.mubr.f32.gmra.mrb[0].mxu0 %v401
        %v471 = vpop.f32.mrb[0].mxu0
        %v472 = vadd.f32 0.0, %v471
        %v473 = vpop.f32.mrb[0].mxu0
        %474 = vdwg.mxu0
        %475 = vst [vmem:[#allocation2] sm:$0xff] %v472
        %v476 = vld [vmem:[#allocation2] sm:$0xff]
        %v477 = vmax.f32 %v476, 0.0
        %v478 = vadd.f32 %v477, 1.0
        %v479 = vlog2.pop %v478
        %v480 = vmul.f32 %v479, 0.6931472
        %v481 = vmul.f32 -0.5, %v477
        %v482 = vadd.f32 %v481, 1.0
        %v483 = vmul.f32 %v482, %v477
        %v484 = vand.u32 2147483647, %v477
        %vm485 = vcmp.lt.f32.partialorder %v484, 0.0004427343
        %v486 = vsel %vm485, %v483, %v480
        %v487 = vld [vmem:[#allocation11] sm:$0xff]
        %v488 = vmul.f32 %v486, %v486
        %vm489 = vcmask 64512
        %v491 = vsel %vm489, %v487, 0
        %493 = vmatprep.subr.mxu0 0.0
        %494 = vmatpush1.msra.mxu0 %v488
        %495 = vmatprep.subr.mxu0 0.0
        %496 = vmatpush1.msra.mxu0 0.0
        %497 = vmatprep.subr.mxu0 0.0
        %498 = vmatpush1.msra.mxu0 0.0
        %499 = vmatprep.subr.mxu0 0.0
        %500 = vmatpush1.msra.mxu0 0.0
        %501 = vmatprep.subr.mxu0 0.0
        %502 = vmatpush1.msra.mxu0 0.0
        %503 = vmatprep.subr.mxu0 0.0
        %504 = vmatpush1.msra.mxu0 0.0
        %505 = vmatprep.subr.mxu0 0.0
        %506 = vmatpush1.msra.mxu0 0.0
        %507 = vmatprep.subr.mxu0 0.0
        %508 = vmatpush1.msra.mxu0 0.0
        %509 = vmatprep.subr.mxu0 0.0
        %510 = vmatpush1.msra.mxu0 0.0
        %511 = vmatprep.subr.mxu0 0.0
        %512 = vmatpush1.msra.mxu0 0.0
        %513 = vmatprep.subr.mxu0 0.0
        %514 = vmatpush1.msra.mxu0 0.0
        %515 = vmatprep.subr.mxu0 0.0
        %516 = vmatpush1.msra.mxu0 0.0
        %517 = vmatprep.subr.mxu0 0.0
        %518 = vmatpush1.msra.mxu0 0.0
        %519 = vmatprep.subr.mxu0 0.0
        %520 = vmatpush1.msra.mxu0 0.0
        %521 = vmatprep.subr.mxu0 0.0
        %522 = vmatpush1.msra.mxu0 0.0
        %523 = vmatprep.subr.mxu0 0.0
        %524 = vmatpush1.msra.mxu0 0.0
        %525 = vmatprep.subr.mxu0 0.0
        %526 = vmatpush1.msra.mxu0 0.0
        %527 = vmatprep.subr.mxu0 0.0
        %528 = vmatpush1.msra.mxu0 0.0
        %529 = vmatprep.subr.mxu0 0.0
        %530 = vmatpush1.msra.mxu0 0.0
        %531 = vmatprep.subr.mxu0 0.0
        %532 = vmatpush1.msra.mxu0 0.0
        %533 = vmatprep.subr.mxu0 0.0
        %534 = vmatpush1.msra.mxu0 0.0
        %535 = vmatprep.subr.mxu0 0.0
        %536 = vmatpush1.msra.mxu0 0.0
        %537 = vmatprep.subr.mxu0 0.0
        %538 = vmatpush1.msra.mxu0 0.0
        %539 = vmatprep.subr.mxu0 0.0
        %540 = vmatpush1.msra.mxu0 0.0
        %541 = vmatprep.subr.mxu0 0.0
        %542 = vmatpush1.msra.mxu0 0.0
        %543 = vmatprep.subr.mxu0 0.0
        %544 = vmatpush1.msra.mxu0 0.0
        %545 = vmatprep.subr.mxu0 0.0
        %546 = vmatpush1.msra.mxu0 0.0
        %547 = vmatprep.subr.mxu0 0.0
        %548 = vmatpush1.msra.mxu0 0.0
        %549 = vmatprep.subr.mxu0 0.0
        %550 = vmatpush1.msra.mxu0 0.0
        %551 = vmatprep.subr.mxu0 0.0
        %552 = vmatpush1.msra.mxu0 0.0
        %553 = vmatprep.subr.mxu0 0.0
        %554 = vmatpush1.msra.mxu0 0.0
        %555 = vmatprep.subr.mxu0 0.0
        %556 = vmatpush1.msra.mxu0 0.0
        %557 = vmatprep.mubr.f32.mxu0 0.0
        %558 = vmatmul.mubr.f32.gmra.mrb[0].mxu0 %v491
        %v559 = vpop.f32.mrb[0].mxu0
        %v560 = vadd.f32 0.0, %v559
        %v561 = vpop.f32.mrb[0].mxu0
        %562 = vdwg.mxu0
        %v563 = vmul.f32 %v560, 1.25e-05
        %v564 = vadd.f32 %v563, 1.0
        %v565 = vrsqrt.pop %v564
        %v566 = vrsqrt.pop %v565
        %v567 = vmul.f32 %v565, %v566
        %vm568 = vcmp.eq.f32.partialorder %v565, inf
        %v569 = vsel %vm568, %v565, %v567
        %vm570 = vcmp.eq.f32.partialorder %v565, 0.0
        %v571 = vand.u32 %v565, 2147483648
        %v572 = vsel %vm570, %v571, %v569
        %v573 = vmul.f32 %v565, %v572
        %v574 = vmul.f32 %v486, %v573
        %575 = vst [vmem:[%s355] sm:$0xff] %v574
        %s576 = sand.u32 %s172, 1
        %s577 = scalar_lea.sflag [#allocation5], %s576
        %s578 = sand.u32 %s172, 1
        %s579 = smul.addr %s578, 8
        %s580 = scalar_lea.vmem [#allocation12], %s579
        // Predicated region
        $region61: #{tpu_custom_call.1} parent=39 // pred_check
          %p581 = pneg %p182
        $region62: #{tpu_custom_call.1} parent=39 // pred_check_branch
          %583 = sbr.rel (%p581) target = $region64
        $region63: #{tpu_custom_call.1} parent=39 // pred_region
          %s585 = ssub.s32 128, 128
          %586 = vsyncadd %s577, %s585
          %s587 = sadd.s32 %s31, %s30
          %s588 = smul.addr %s587, 128
          %s589 = scalar_lea.hbm %s5, %s588
          %s591 = sshll.u32 %s580, 4
          %s592 = int_to_ptr.vmem [resolvable:$true] %s591
          %594 = dma.vmem_to_hbm [thread:$0]  %s592, 128, %s589, %s577
        $region64: #{tpu_custom_call.1} parent=39 // pred_fallthru
          _
      $region40: #{tpu_custom_call.1} parent=5 // pred_fallthru
        _
      %p595 = scmp.le.s32.totalorder 2, %s21
      // Predicated region
      $region65: #{tpu_custom_call.1} parent=5 // pred_check
        %p596 = pneg %p595
      $region66: #{tpu_custom_call.1} parent=5 // pred_check_branch
        %598 = sbr.rel (%p596) target = $region68
      $region67: #{tpu_custom_call.1} parent=5 // pred_region
        %s599 = ssub.s32 %s21, 2
        // Predicated region
        $region69: #{tpu_custom_call.1} parent=67 // pred_check
          %p600 = pneg %p188
        $region70: #{tpu_custom_call.1} parent=67 // pred_check_branch
          %602 = sbr.rel (%p600) target = $region72
        $region71: #{tpu_custom_call.1} parent=67 // pred_region
          %s603 = sand.u32 %s173, 1
          %s604 = scalar_lea.sflag [#allocation5], %s603
          %s605 = sand.u32 %s173, 1
          %s606 = smul.addr %s605, 8
          %s607 = scalar_lea.vmem [#allocation12], %s606
          %608 = dma.done %s604, 128
        $region72: #{tpu_custom_call.1} parent=67 // pred_fallthru
          _
      $region68: #{tpu_custom_call.1} parent=5 // pred_fallthru
        _
    $region6: #{tpu_custom_call.1} parent=1 // loop_footer
      %s25 = sadd.s32 1, %s21
    $region7: #{tpu_custom_call.1} parent=1 // loop_footer_branch
      %20 = sbr.rel target = $region3
    $region8: #{tpu_custom_call.1} parent=1 // loop_exit
      _
    %609 = vsyncpa [#allocation4], 1
    %s610 = scalar_lea.sflag [#allocation4], 1
    %611 = vsyncpa %s610, 1
    %612 = vsyncpa [#allocation7], 1
    %s613 = scalar_lea.sflag [#allocation7], 1
    %614 = vsyncpa %s613, 1
    %615 = vsyncpa [#allocation10], 1
    %616 = vsyncpa [#allocation5], 1
    %s617 = scalar_lea.sflag [#allocation5], 1
    %618 = vsyncpa %s617, 1

</llo_original>
